<compile_context>
chip_gen: v7x
topology: tpu7x:2x2x1
jax: 0.10.0
libtpu: 0.0.40
codegen_flags: <defaults>
</compile_context>

<pallas_src>
import jax
import jax.numpy as jnp
from jax.experimental import pallas as pl
from jax.experimental.pallas import tpu as pltpu


def _round_up(x, m):
    return ((x + m - 1) // m) * m


def bert_head_kernel(x_ref, w_ref, b_ref, o_ref):
    # x_ref: (TB, E)  pooled-activation tile (compute dtype, e.g. bf16)
    # w_ref: (E, Cp)  fused weight, resident across the grid
    # b_ref: (1, Cp)  fused bias, f32 (epilogue stays f32 -> safe on v5e)
    # o_ref: (TB, Cp) lane-dense output tile
    y = jnp.dot(x_ref[...], w_ref[...], preferred_element_type=jnp.float32)
    o_ref[...] = (y + b_ref[...]).astype(o_ref.dtype)


def prepare_bert_head_params(w1, b1, w2, b2, *, compute_dtype=jnp.bfloat16):
    """Fold Dropout[eval] -> Linear(E,E) -> Linear(E,C) into one matmul.

    Called ONCE at parameter-load time, not per forward call.  Weights are
    stored (in_features, out_features), i.e. transposed vs nn.Linear.weight,
    so the math is `x @ W + b`.  W_eff is rounded to compute_dtype exactly
    once here; b_eff stays f32.
    """
    E = w1.shape[0]
    C = w2.shape[1]
    w_eff = jnp.dot(w1.astype(jnp.float32), w2.astype(jnp.float32),
                    preferred_element_type=jnp.float32)                 # (E, C)
    b_eff = (jnp.dot(b1.reshape(1, E).astype(jnp.float32),
                     w2.astype(jnp.float32),
                     preferred_element_type=jnp.float32)
             + b2.reshape(1, C).astype(jnp.float32))                    # (1, C)

    # Lane-dense classifier dim: 128 for small heads (matches v5e MXU width),
    # 256-aligned for big heads so the v6e/v7x 2x256x256 MXU N-dim stays full.
    c_pad = _round_up(C, 128) if C <= 128 else _round_up(C, 256)
    if c_pad != C:
        w_eff = jnp.pad(w_eff, ((0, 0), (0, c_pad - C)))
        b_eff = jnp.pad(b_eff, ((0, 0), (0, c_pad - C)))

    return {
        "w_eff": w_eff.astype(compute_dtype),   # single one-time rounding
        "b_eff": b_eff,                          # bias stays f32
        "num_classes": C,
        "compute_dtype": jnp.dtype(compute_dtype),
    }


def _choose_batch_tiling(batch, b_align, *, cap=512, min_steps=2):
    """Pick a batch tile: multiple of b_align, <= cap, exactly dividing the
    sublane-aligned batch (so no jnp.pad beyond alignment), preferring
    >= min_steps grid steps so the 'parallel' axis can shard across both
    v7x TensorCores once the batch is large enough."""
    b_aligned = _round_up(batch, b_align)
    target = max(b_align,
                 min(cap, _round_up(pl.cdiv(b_aligned, min_steps), b_align)))
    blk = target
    while blk > b_align and b_aligned % blk != 0:
        blk -= b_align
    return blk, b_aligned


def bert_linear_head(pool_out, head_params, *, out_dtype=jnp.float32,
                     block_b_cap=512):
    """Fused classification head `pool_out @ W_eff + b_eff` via Pallas."""
    B, E = pool_out.shape
    w_eff = head_params["w_eff"]
    b_eff = head_params["b_eff"]
    C = head_params["num_classes"]
    compute_dtype = head_params["compute_dtype"]
    c_pad = w_eff.shape[1]

    # x should already arrive in compute_dtype (cast upstream, straight out of
    # the pooler); casting here would add a full HBM pass over x.
    if pool_out.dtype != compute_dtype:
        pool_out = pool_out.astype(compute_dtype)

    itemsize = jnp.dtype(compute_dtype).itemsize
    b_align = 16 if itemsize == 2 else 8        # clean sublane packing for bf16
    block_b, b_pad = _choose_batch_tiling(B, b_align, cap=block_b_cap)
    if b_pad != B:
        pool_out = jnp.pad(pool_out, ((0, b_pad - B), (0, 0)))
    grid = (b_pad // block_b,)

    # VMEM: only the x / out tiles are multi-buffered; the constant-index_map
    # weight & bias are DMA'd once and stay resident.
    x_tile = block_b * E * itemsize
    o_tile = block_b * c_pad * jnp.dtype(out_dtype).itemsize
    w_bytes = E * c_pad * itemsize
    bias_bytes = c_pad * 4
    vmem_needed = 2 * (x_tile + o_tile) + w_bytes + bias_bytes
    # Cap at 48 MiB: leaves headroom on v7x (64 MiB per TensorCore).
    vmem_limit = int(min(48 << 20, max(vmem_needed + (4 << 20), 16 << 20)))

    bytes_accessed = (b_pad * E * itemsize + w_bytes + bias_bytes
                      + b_pad * c_pad * jnp.dtype(out_dtype).itemsize)
    cost = pl.CostEstimate(flops=2 * b_pad * E * c_pad,
                           transcendentals=0,
                           bytes_accessed=bytes_accessed)

    out = pl.pallas_call(
        bert_head_kernel,
        out_shape=jax.ShapeDtypeStruct((b_pad, c_pad), out_dtype),
        grid_spec=pltpu.PrefetchScalarGridSpec(
            num_scalar_prefetch=0,
            grid=grid,
            in_specs=[
                pl.BlockSpec((block_b, E), lambda i: (i, 0)),  # x tile (pipelined)
                pl.BlockSpec((E, c_pad), lambda i: (0, 0)),    # fused weight (resident)
                pl.BlockSpec((1, c_pad), lambda i: (0, 0)),    # fused bias (resident)
            ],
            out_specs=pl.BlockSpec((block_b, c_pad), lambda i: (i, 0)),
        ),
        compiler_params=pltpu.CompilerParams(
            dimension_semantics=("parallel",),
            vmem_limit_bytes=vmem_limit),
        cost_estimate=cost,
    )(pool_out, w_eff, b_eff)

    # Padded batch rows / classifier columns exist only pre-slice; nothing
    # else may consume the un-sliced output.
    return out[:B, :C]


def bert_model_standin(token_ids, embed_table, *, out_dtype=jnp.bfloat16):
    # TODO(synk): the real `bert_model` is an external black-box module; this
    # stand-in (embedding lookup + mean pool) only mimics its (B, E) output.
    emb = jnp.take(embed_table, token_ids, axis=0)           # (B, S, E)
    # Emit pooled activations directly in the head's compute dtype so the
    # Pallas wrapper never re-reads x from HBM just to cast it.
    return jnp.mean(emb, axis=1).astype(out_dtype)           # (B, E)


def bert_linear_forward(token_ids, params, head_params):
    pool_out = bert_model_standin(token_ids, params["embed_table"],
                                  out_dtype=head_params["compute_dtype"])
    # Dropout in eval mode == identity.
    return bert_linear_head(pool_out, head_params)


if __name__ == "__main__":
    batch, seq, embed_dim, classify_num, vocab = 8, 8, 32, 4, 64

    key = jax.random.PRNGKey(0)
    k_emb, k_w1, k_b1, k_w2, k_b2, k_ids = jax.random.split(key, 6)

    params = {
        "embed_table": jax.random.normal(k_emb, (vocab, embed_dim), jnp.float32) * 0.02,
        "w1": jax.random.normal(k_w1, (embed_dim, embed_dim), jnp.float32) * 0.02,
        "b1": jax.random.normal(k_b1, (embed_dim,), jnp.float32) * 0.02,
        "w2": jax.random.normal(k_w2, (embed_dim, classify_num), jnp.float32) * 0.02,
        "b2": jax.random.normal(k_b2, (classify_num,), jnp.float32) * 0.02,
    }
    token_ids = jax.random.randint(k_ids, (batch, seq), 0, vocab)

    # Fold the two Linears ONCE (parameter-load time), bf16 compute by default.
    head_params = prepare_bert_head_params(params["w1"], params["b1"],
                                           params["w2"], params["b2"],
                                           compute_dtype=jnp.bfloat16)

    out = bert_linear_forward(token_ids, params, head_params)
    out = jax.block_until_ready(out)

    # Reference check in plain JAX f32 (un-fused two-layer form).  bf16 inputs
    # + the one-time bf16 rounding of W_eff => loosened tolerance vs f32 ref.
    pool_ref = jnp.mean(jnp.take(params["embed_table"], token_ids, axis=0), axis=1)
    ref = pool_ref @ params["w1"] + params["b1"]
    ref = ref @ params["w2"] + params["b2"]
    assert out.shape == (batch, classify_num)
    assert jnp.allclose(out.astype(jnp.float32), ref, atol=2e-3, rtol=2e-2), (
        float(jnp.max(jnp.abs(out.astype(jnp.float32) - ref))))

    print("KERNEL_OK")
</pallas_src>

<mosaic_0001>
module attributes {stable_mosaic.version = 11 : i64} {
  func.func @bert_head_kernel(%arg0: i32, %arg1: memref<16x32xbf16, #tpu.memory_space<vmem>>, %arg2: memref<32x128xbf16, #tpu.memory_space<vmem>>, %arg3: memref<1x128xf32, #tpu.memory_space<vmem>>, %arg4: memref<16x128xf32, #tpu.memory_space<vmem>>) attributes {dimension_semantics = [#tpu.dimension_semantics<parallel>], iteration_bounds = array<i64: 1>, scalar_prefetch = 0 : i64, scratch_operands = 0 : i64, tpu.core_type = #tpu.core_type<tc>, window_params = [{transform_indices = @transform_0, window_bounds = array<i64: 16, 32>}, {pipeline_mode = #tpu.pipeline_mode<synchronous>, transform_indices = @transform_1, window_bounds = array<i64: 32, 128>}, {pipeline_mode = #tpu.pipeline_mode<synchronous>, transform_indices = @transform_2, window_bounds = array<i64: 1, 128>}, {transform_indices = @transform_3, window_bounds = array<i64: 16, 128>}]} {
    %c0 = arith.constant 0 : index
    %c0_0 = arith.constant 0 : index
    %0 = vector.load %arg1[%c0, %c0_0] : memref<16x32xbf16, #tpu.memory_space<vmem>>, vector<16x32xbf16>
    %c0_1 = arith.constant 0 : index
    %c0_2 = arith.constant 0 : index
    %1 = vector.load %arg2[%c0_1, %c0_2] : memref<32x128xbf16, #tpu.memory_space<vmem>>, vector<32x128xbf16>
    %cst = arith.constant dense<0.000000e+00> : vector<16x128xf32>
    %2 = tpu.matmul %0, %1, %cst {dimension_numbers = #tpu.dot_dimension_numbers<[1], [0], [0], [1], [0, 0, 1, 1], [], []>} : vector<16x32xbf16>, vector<32x128xbf16>, vector<16x128xf32> -> vector<16x128xf32>
    %c0_3 = arith.constant 0 : index
    %c0_4 = arith.constant 0 : index
    %3 = vector.load %arg3[%c0_3, %c0_4] : memref<1x128xf32, #tpu.memory_space<vmem>>, vector<1x128xf32>
    %4 = vector.broadcast %3 : vector<1x128xf32> to vector<16x128xf32>
    %5 = arith.addf %2, %4 : vector<16x128xf32>
    %c0_5 = arith.constant 0 : index
    %c0_6 = arith.constant 0 : index
    %6 = vector.load %arg4[%c0_5, %c0_6] : memref<16x128xf32, #tpu.memory_space<vmem>>, vector<16x128xf32>
    tpu.vector_store %arg4[%c0_5, %c0_6], %5 {strides = array<i32>} : memref<16x128xf32, #tpu.memory_space<vmem>>, vector<16x128xf32>,
    return
  }
  func.func @transform_0(%arg0: i32) -> (i32, i32) {
    %c0_i32 = arith.constant 0 : i32
    %c0_i32_0 = arith.constant 0 : i32
    return %arg0, %c0_i32 : i32, i32
  }
  func.func @transform_1(%arg0: i32) -> (i32, i32) {
    %c0_i32 = arith.constant 0 : i32
    %c0_i32_0 = arith.constant 0 : i32
    %c0_i32_1 = arith.constant 0 : i32
    return %c0_i32, %c0_i32_0 : i32, i32
  }
  func.func @transform_2(%arg0: i32) -> (i32, i32) {
    %c0_i32 = arith.constant 0 : i32
    %c0_i32_0 = arith.constant 0 : i32
    %c0_i32_1 = arith.constant 0 : i32
    return %c0_i32, %c0_i32_0 : i32, i32
  }
  func.func @transform_3(%arg0: i32) -> (i32, i32) {
    %c0_i32 = arith.constant 0 : i32
    %c0_i32_0 = arith.constant 0 : i32
    return %arg0, %c0_i32 : i32, i32
  }
}

</mosaic_0001>

<llo_original>
// kernel: tpu_custom_call.1
$region0: #{tpu_custom_call.1}
  #allocation0 [shape = 'u32[]', space=smem, size = 0x4, offset = 0x4, fixed_abs, tag = 'smem constant byte address 0x4 - core index']
  #allocation1 [shape = 'u32[144,128]{1,0:T(1,128)}', space=vmem, size = 0x12000, scoped, tag = 'internal scratch']
  %s0 = inlined_call_operand.hbm [shape: bf16[16,32], index: 0, kind: input, shape index: {}]
  %s1 = inlined_call_operand.hbm [shape: bf16[32,128], index: 1, kind: input, shape index: {}]
  %s2 = inlined_call_operand.vmem [shape: f32[1,128], index: 2, kind: input, shape index: {}]
  %s3 = inlined_call_operand.hbm [shape: f32[16,128], index: 3, kind: output, shape index: {}]
  %s4 = sld [smem:[#allocation0]]
  $region30: #{tpu_custom_call.1} parent=0
    _
  %s6 = ssub.s32 1, %s4
  %s7 = scalar_select 0, %s6, %s4
  $region1: #{tpu_custom_call.1} parent=0
    #allocation2 [shape = 'u8[4096]{0}', space=vmem, size = 0x1000, scoped, tag = 'input window, operand 0, single buffered']
    #allocation3 [shape = 's32[1]{0}', space=sflag, size = 0x4, scoped, tag = 'scoped memory for tpu_custom_call.1']
    #allocation4 [shape = 's32[1]{0}', space=sflag, size = 0x4, scoped, tag = 'scoped memory for tpu_custom_call.1']
    #allocation5 [shape = 'u8[8192]{0}', space=vmem, size = 0x2000, scoped, tag = 'input window, operand 1, single buffered']
    #allocation6 [shape = 's32[1]{0}', space=sflag, size = 0x4, scoped, tag = 'scoped memory for tpu_custom_call.1']
    #allocation7 [shape = 'u8[8192]{0}', space=vmem, size = 0x2000, scoped, tag = 'output window, operand 0, single buffered']
    %8 = vsyncpa [#allocation3], 0
    %9 = vsyncpa [#allocation6], 0
    %10 = vsyncpa [#allocation4], 0
    // Predicated region
    $region2: #{tpu_custom_call.1} parent=1 // pred_check
      _
    $region3: #{tpu_custom_call.1} parent=1 // pred_check_branch
      %12 = sbr.rel (0) target = $region5
    $region4: #{tpu_custom_call.1} parent=1 // pred_region
      %s14 = ssub.s32 128, 128
      %15 = vsyncadd [#allocation3], %s14
      %s16 = sshll.u32 [#allocation2], 4
      %s17 = int_to_ptr.vmem [resolvable:$true] %s16
      %22 = dma.hbm_to_vmem [thread:$0]  %s0, 128, %s17, [#allocation3], 64, 64, 4
    $region5: #{tpu_custom_call.1} parent=1 // pred_fallthru
      _
    // Predicated region
    $region6: #{tpu_custom_call.1} parent=1 // pred_check
      _
    $region7: #{tpu_custom_call.1} parent=1 // pred_check_branch
      %24 = sbr.rel (0) target = $region9
    $region8: #{tpu_custom_call.1} parent=1 // pred_region
      %s26 = ssub.s32 256, 256
      %27 = vsyncadd [#allocation6], %s26
      %s28 = sshll.u32 [#allocation5], 4
      %s29 = int_to_ptr.vmem [resolvable:$true] %s28
      %34 = dma.hbm_to_vmem [thread:$0]  %s1, 256, %s29, [#allocation6], 64, 64, 4
    $region9: #{tpu_custom_call.1} parent=1 // pred_fallthru
      _
    // Predicated region
    $region10: #{tpu_custom_call.1} parent=1 // pred_check
      _
    $region11: #{tpu_custom_call.1} parent=1 // pred_check_branch
      %36 = sbr.rel (0) target = $region13
    $region12: #{tpu_custom_call.1} parent=1 // pred_region
      _
    $region13: #{tpu_custom_call.1} parent=1 // pred_fallthru
      _
    // Predicated region
    $region14: #{tpu_custom_call.1} parent=1 // pred_check
      _
    $region15: #{tpu_custom_call.1} parent=1 // pred_check_branch
      %38 = sbr.rel (0) target = $region17
    $region16: #{tpu_custom_call.1} parent=1 // pred_region
      %39 = dma.done [#allocation3], 128
    $region17: #{tpu_custom_call.1} parent=1 // pred_fallthru
      _
    // Predicated region
    $region18: #{tpu_custom_call.1} parent=1 // pred_check
      _
    $region19: #{tpu_custom_call.1} parent=1 // pred_check_branch
      %41 = sbr.rel (0) target = $region21
    $region20: #{tpu_custom_call.1} parent=1 // pred_region
      %42 = dma.done [#allocation6], 256
    $region21: #{tpu_custom_call.1} parent=1 // pred_fallthru
      _
    %v44 = vld [vmem:[#allocation2] sm:$0xf]
    %v45 = vld [vmem:[#allocation2 + $0x4] sm:$0xf]
    %v46 = vld [vmem:[#allocation5] sm:$0xf]
    %v47 = vld [vmem:[#allocation5 + $0x4] sm:$0xf]
    %v48 = vld [vmem:[#allocation5 + $0x8] sm:$0xf]
    %v49 = vld [vmem:[#allocation5 + $0xc] sm:$0xf]
    %v50 = vld [vmem:[%s2] sm:$0x1]
    %v52 = vlaneseq
    %v53 = vshrl.u32 %v52, 7
    %v54 = vsub.s32 0, %v53
    %v55 = vrot.slane %v50, %v54
    %v59 = vunpack.c.l.b16 %v44
    %v60 = vunpack.c.l.b16 %v45
    %v61 = vpack.c.b16 %v60, %v59
    %v66 = vunpack.c.l.b16 %v46
    %v67 = vunpack.c.l.b16 %v47
    %v68 = vunpack.c.l.b16 %v48
    %v69 = vunpack.c.l.b16 %v49
    %v70 = vpack.c.b16 %v67, %v66
    %v71 = vpack.c.b16 %v69, %v68
    %vm74 = vcmask 261120
    %v76 = vsel %vm74, %v61, 0
    %78 = vmatprep.subr.bf16.mxu0 0
    %79 = vmatpush1.bf16.msra.mxu0 %v70
    %80 = vmatprep.subr.bf16.mxu0 0
    %81 = vmatpush1.bf16.msra.mxu0 %v71
    %82 = vmatprep.subr.bf16.mxu0 0
    %83 = vmatpush1.bf16.msra.mxu0 0
    %84 = vmatprep.subr.bf16.mxu0 0
    %85 = vmatpush1.bf16.msra.mxu0 0
    %86 = vmatprep.subr.bf16.mxu0 0
    %87 = vmatpush1.bf16.msra.mxu0 0
    %88 = vmatprep.subr.bf16.mxu0 0
    %89 = vmatpush1.bf16.msra.mxu0 0
    %90 = vmatprep.subr.bf16.mxu0 0
    %91 = vmatpush1.bf16.msra.mxu0 0
    %92 = vmatprep.subr.bf16.mxu0 0
    %93 = vmatpush1.bf16.msra.mxu0 0
    %94 = vmatprep.subr.bf16.mxu0 0
    %95 = vmatpush1.bf16.msra.mxu0 0
    %96 = vmatprep.subr.bf16.mxu0 0
    %97 = vmatpush1.bf16.msra.mxu0 0
    %98 = vmatprep.subr.bf16.mxu0 0
    %99 = vmatpush1.bf16.msra.mxu0 0
    %100 = vmatprep.subr.bf16.mxu0 0
    %101 = vmatpush1.bf16.msra.mxu0 0
    %102 = vmatprep.subr.bf16.mxu0 0
    %103 = vmatpush1.bf16.msra.mxu0 0
    %104 = vmatprep.subr.bf16.mxu0 0
    %105 = vmatpush1.bf16.msra.mxu0 0
    %106 = vmatprep.subr.bf16.mxu0 0
    %107 = vmatpush1.bf16.msra.mxu0 0
    %108 = vmatprep.subr.bf16.mxu0 0
    %109 = vmatpush1.bf16.msra.mxu0 0
    %110 = vmatprep.mubr.bf16.mxu0 0
    %111 = vmatmul.mubr.bf16.gmra.mrb[0].mxu0 %v76
    %v112 = vpop.f32.mrb[0].mxu0
    %v113 = vadd.f32 %v55, %v112
    %v114 = vpop.f32.mrb[0].mxu0
    %v115 = vpop.f32.mrb[0].mxu0
    %v116 = vadd.f32 %v55, %v115
    %v117 = vpop.f32.mrb[0].mxu0
    %118 = vdwg.mxu0
    %119 = vst [vmem:[#allocation7] sm:$0xff] %v113
    %120 = vst [vmem:[#allocation7 + $0x8] sm:$0xff] %v116
    // Predicated region
    $region22: #{tpu_custom_call.1} parent=1 // pred_check
      _
    $region23: #{tpu_custom_call.1} parent=1 // pred_check_branch
      %122 = sbr.rel (0) target = $region25
    $region24: #{tpu_custom_call.1} parent=1 // pred_region
      %s124 = ssub.s32 256, 256
      %125 = vsyncadd [#allocation4], %s124
      %s126 = sshll.u32 [#allocation7], 4
      %s127 = int_to_ptr.vmem [resolvable:$true] %s126
      %132 = dma.vmem_to_hbm [thread:$0]  %s127, 256, %s3, [#allocation4], 128, 128, 8
    $region25: #{tpu_custom_call.1} parent=1 // pred_fallthru
      _
    // Predicated region
    $region26: #{tpu_custom_call.1} parent=1 // pred_check
      _
    $region27: #{tpu_custom_call.1} parent=1 // pred_check_branch
      %134 = sbr.rel (0) target = $region29
    $region28: #{tpu_custom_call.1} parent=1 // pred_region
      %135 = dma.done [#allocation4], 256
    $region29: #{tpu_custom_call.1} parent=1 // pred_fallthru
      _
    %136 = vsyncpa [#allocation3], 1
    %137 = vsyncpa [#allocation6], 1
    %138 = vsyncpa [#allocation4], 1

</llo_original>
